<compile_context>
chip_gen: v6e
topology: v6e:2x2x1
jax: 0.10.0
libtpu: 0.0.40
codegen_flags: <defaults>
</compile_context>

<pallas_src>
import math

import jax
import jax.numpy as jnp
from jax.experimental import pallas as pl
from jax.experimental.pallas import tpu as pltpu


def _ffn_kernel(x_ref, w1_ref, b1_ref, w2_ref, b2_ref, o_ref):
    # x_ref : (bm, D_in)      bf16
    # w1_ref: (D_in, D_h)     bf16   (grid-resident)
    # b1_ref: (1, D_h)        f32    (grid-resident)
    # w2_ref: (D_h, D_out_pad) bf16  (grid-resident, zero-padded to 128 lanes)
    # b2_ref: (1, D_out_pad)  f32    (grid-resident, zero-padded)
    # o_ref : (bm, D_out_pad) f32    (lane-dense output tile)

    # Layer 1: Linear + ReLU (dropout p=0.0 -> identity)
    h = jnp.dot(x_ref[...], w1_ref[...], preferred_element_type=jnp.float32)
    h = jnp.maximum(h + b1_ref[...], 0.0)

    # Layer 2: Linear + ReLU (dropout p=0.0 -> identity)
    y = jnp.dot(h.astype(w2_ref.dtype), w2_ref[...],
                preferred_element_type=jnp.float32)
    y = jnp.maximum(y + b2_ref[...], 0.0)

    o_ref[...] = y.astype(o_ref.dtype)


def feedforward_pallas(x, w1, b1, w2, b2, *, bm=512):
    """Fused 2-layer FeedForward (Linear+ReLU, Linear+ReLU), dropout p=0.0.

    Args:
      x : (B, D_in) float32 input.
      w1: (D_h, D_in)  PyTorch-layout weight of layer 1.
      b1: (D_h,)       bias of layer 1.
      w2: (D_out, D_h) PyTorch-layout weight of layer 2.
      b2: (D_out,)     bias of layer 2.
    Returns:
      (B, D_out) float32 output.
    """
    B, D_in = x.shape
    D_h = w1.shape[0]
    D_out = w2.shape[0]
    LANE = 128

    # --- wrapper-side layout plumbing (no HBM cost beyond the padded output) ---
    # Pre-transpose to (in, out); zero-pad the final out-dim to a lane-dense 128.
    w1_t = jnp.asarray(w1, jnp.float32).T.astype(jnp.bfloat16)          # (D_in, D_h)
    b1_r = jnp.asarray(b1, jnp.float32).reshape(1, D_h)                 # (1, D_h)
    d_out_pad = max(LANE, ((D_out + LANE - 1) // LANE) * LANE)
    w2_t = jnp.zeros((D_h, d_out_pad), jnp.float32).at[:, :D_out].set(
        jnp.asarray(w2, jnp.float32).T).astype(jnp.bfloat16)            # (D_h, 128)
    b2_r = jnp.zeros((1, d_out_pad), jnp.float32).at[:, :D_out].set(
        jnp.asarray(b2, jnp.float32).reshape(1, D_out))                 # (1, 128)

    # Batch tiling: pad B up so the grid divides evenly (OOB VMEM reads are not
    # runtime-checked, so we pad explicitly rather than rely on it).
    bm_eff = min(bm, ((B + 7) // 8) * 8)
    b_pad = ((B + bm_eff - 1) // bm_eff) * bm_eff
    x_p = x
    if b_pad != B:
        x_p = jnp.zeros((b_pad, D_in), x.dtype).at[:B].set(x)
    x_bf16 = x_p.astype(jnp.bfloat16)

    grid = (b_pad // bm_eff,)

    out = pl.pallas_call(
        _ffn_kernel,
        out_shape=jax.ShapeDtypeStruct((b_pad, d_out_pad), jnp.float32),
        grid_spec=pltpu.PrefetchScalarGridSpec(
            num_scalar_prefetch=0,
            grid=grid,
            in_specs=[
                pl.BlockSpec((bm_eff, D_in), lambda i: (i, 0)),     # x tile
                pl.BlockSpec((D_in, D_h), lambda i: (0, 0)),        # W1 (resident)
                pl.BlockSpec((1, D_h), lambda i: (0, 0)),           # b1 (resident)
                pl.BlockSpec((D_h, d_out_pad), lambda i: (0, 0)),   # W2 (resident)
                pl.BlockSpec((1, d_out_pad), lambda i: (0, 0)),     # b2 (resident)
            ],
            out_specs=pl.BlockSpec((bm_eff, d_out_pad), lambda i: (i, 0)),
        ),
        compiler_params=pltpu.CompilerParams(
            dimension_semantics=("parallel",),
        ),
    )(x_bf16, w1_t, b1_r, w2_t, b2_r)

    return out[:B, :D_out]


def _reference(x, w1, b1, w2, b2):
    h = jnp.maximum(x @ w1.T + b1, 0.0)
    y = jnp.maximum(h @ w2.T + b2, 0.0)
    return y


if __name__ == "__main__":
    # FeedForward(input_dim=32, num_layers=2, hidden_dims=[64, 32], ReLU, dropout=0.0)
    B, D_IN, D_H, D_OUT = 1024, 32, 64, 32

    key = jax.random.PRNGKey(0)
    k1, k2, k3, k4, k5 = jax.random.split(key, 5)
    x = jax.random.normal(k1, (B, D_IN), jnp.float32)
    w1 = jax.random.normal(k2, (D_H, D_IN), jnp.float32) * (1.0 / math.sqrt(D_IN))
    b1 = jax.random.normal(k3, (D_H,), jnp.float32) * 0.1
    w2 = jax.random.normal(k4, (D_OUT, D_H), jnp.float32) * (1.0 / math.sqrt(D_H))
    b2 = jax.random.normal(k5, (D_OUT,), jnp.float32) * 0.1

    out = feedforward_pallas(x, w1, b1, w2, b2, bm=512)
    out = jax.block_until_ready(out)

    ref = _reference(x, w1, b1, w2, b2)
    assert out.shape == (B, D_OUT), out.shape
    # bf16 HBM-resident activations/weights with f32 accumulation -> loose tol.
    assert jnp.allclose(out, ref, atol=5e-2, rtol=5e-2), (
        float(jnp.max(jnp.abs(out - ref))))

    print("KERNEL_OK")
</pallas_src>

<mosaic_0001>
module attributes {stable_mosaic.version = 11 : i64} {
  func.func @_ffn_kernel(%arg0: i32, %arg1: memref<512x32xbf16, #tpu.memory_space<vmem>>, %arg2: memref<32x64xbf16, #tpu.memory_space<vmem>>, %arg3: memref<1x64xf32, #tpu.memory_space<vmem>>, %arg4: memref<64x128xbf16, #tpu.memory_space<vmem>>, %arg5: memref<1x128xf32, #tpu.memory_space<vmem>>, %arg6: memref<512x128xf32, #tpu.memory_space<vmem>>) attributes {dimension_semantics = [#tpu.dimension_semantics<parallel>], iteration_bounds = array<i64: 2>, scalar_prefetch = 0 : i64, scratch_operands = 0 : i64, tpu.core_type = #tpu.core_type<tc>, window_params = [{transform_indices = @transform_0, window_bounds = array<i64: 512, 32>}, {pipeline_mode = #tpu.pipeline_mode<synchronous>, transform_indices = @transform_1, window_bounds = array<i64: 32, 64>}, {pipeline_mode = #tpu.pipeline_mode<synchronous>, transform_indices = @transform_2, window_bounds = array<i64: 1, 64>}, {pipeline_mode = #tpu.pipeline_mode<synchronous>, transform_indices = @transform_3, window_bounds = array<i64: 64, 128>}, {pipeline_mode = #tpu.pipeline_mode<synchronous>, transform_indices = @transform_4, window_bounds = array<i64: 1, 128>}, {transform_indices = @transform_5, window_bounds = array<i64: 512, 128>}]} {
    %c0 = arith.constant 0 : index
    %c0_0 = arith.constant 0 : index
    %0 = vector.load %arg1[%c0, %c0_0] : memref<512x32xbf16, #tpu.memory_space<vmem>>, vector<512x32xbf16>
    %c0_1 = arith.constant 0 : index
    %c0_2 = arith.constant 0 : index
    %1 = vector.load %arg2[%c0_1, %c0_2] : memref<32x64xbf16, #tpu.memory_space<vmem>>, vector<32x64xbf16>
    %cst = arith.constant dense<0.000000e+00> : vector<512x64xf32>
    %2 = tpu.matmul %0, %1, %cst {dimension_numbers = #tpu.dot_dimension_numbers<[1], [0], [0], [1], [0, 0, 1, 1], [], []>} : vector<512x32xbf16>, vector<32x64xbf16>, vector<512x64xf32> -> vector<512x64xf32>
    %c0_3 = arith.constant 0 : index
    %c0_4 = arith.constant 0 : index
    %3 = vector.load %arg3[%c0_3, %c0_4] : memref<1x64xf32, #tpu.memory_space<vmem>>, vector<1x64xf32>
    %4 = vector.broadcast %3 : vector<1x64xf32> to vector<512x64xf32>
    %5 = arith.addf %2, %4 : vector<512x64xf32>
    %cst_5 = arith.constant 0.000000e+00 : f32
    %6 = vector.broadcast %cst_5 : f32 to vector<512x64xf32>
    %7 = arith.maximumf %5, %6 : vector<512x64xf32>
    %8 = arith.truncf %7 : vector<512x64xf32> to vector<512x64xbf16>
    %c0_6 = arith.constant 0 : index
    %c0_7 = arith.constant 0 : index
    %9 = vector.load %arg4[%c0_6, %c0_7] : memref<64x128xbf16, #tpu.memory_space<vmem>>, vector<64x128xbf16>
    %cst_8 = arith.constant dense<0.000000e+00> : vector<512x128xf32>
    %10 = tpu.matmul %8, %9, %cst_8 {dimension_numbers = #tpu.dot_dimension_numbers<[1], [0], [0], [1], [0, 0, 1, 1], [], []>} : vector<512x64xbf16>, vector<64x128xbf16>, vector<512x128xf32> -> vector<512x128xf32>
    %c0_9 = arith.constant 0 : index
    %c0_10 = arith.constant 0 : index
    %11 = vector.load %arg5[%c0_9, %c0_10] : memref<1x128xf32, #tpu.memory_space<vmem>>, vector<1x128xf32>
    %12 = vector.broadcast %11 : vector<1x128xf32> to vector<512x128xf32>
    %13 = arith.addf %10, %12 : vector<512x128xf32>
    %cst_11 = arith.constant 0.000000e+00 : f32
    %14 = vector.broadcast %cst_11 : f32 to vector<512x128xf32>
    %15 = arith.maximumf %13, %14 : vector<512x128xf32>
    %c0_12 = arith.constant 0 : index
    %c0_13 = arith.constant 0 : index
    %16 = vector.load %arg6[%c0_12, %c0_13] : memref<512x128xf32, #tpu.memory_space<vmem>>, vector<512x128xf32>
    tpu.vector_store %arg6[%c0_12, %c0_13], %15 {strides = array<i32>} : memref<512x128xf32, #tpu.memory_space<vmem>>, vector<512x128xf32>,
    return
  }
  func.func @transform_0(%arg0: i32) -> (i32, i32) {
    %c0_i32 = arith.constant 0 : i32
    %c0_i32_0 = arith.constant 0 : i32
    return %arg0, %c0_i32 : i32, i32
  }
  func.func @transform_1(%arg0: i32) -> (i32, i32) {
    %c0_i32 = arith.constant 0 : i32
    %c0_i32_0 = arith.constant 0 : i32
    %c0_i32_1 = arith.constant 0 : i32
    return %c0_i32, %c0_i32_0 : i32, i32
  }
  func.func @transform_2(%arg0: i32) -> (i32, i32) {
    %c0_i32 = arith.constant 0 : i32
    %c0_i32_0 = arith.constant 0 : i32
    %c0_i32_1 = arith.constant 0 : i32
    return %c0_i32, %c0_i32_0 : i32, i32
  }
  func.func @transform_3(%arg0: i32) -> (i32, i32) {
    %c0_i32 = arith.constant 0 : i32
    %c0_i32_0 = arith.constant 0 : i32
    %c0_i32_1 = arith.constant 0 : i32
    return %c0_i32, %c0_i32_0 : i32, i32
  }
  func.func @transform_4(%arg0: i32) -> (i32, i32) {
    %c0_i32 = arith.constant 0 : i32
    %c0_i32_0 = arith.constant 0 : i32
    %c0_i32_1 = arith.constant 0 : i32
    return %c0_i32, %c0_i32_0 : i32, i32
  }
  func.func @transform_5(%arg0: i32) -> (i32, i32) {
    %c0_i32 = arith.constant 0 : i32
    %c0_i32_0 = arith.constant 0 : i32
    return %arg0, %c0_i32 : i32, i32
  }
}

</mosaic_0001>

<llo_original>
// kernel: tpu_custom_call.1
$region0: #{tpu_custom_call.1}
  #allocation0 [shape = 'u32[]', space=smem, size = 0x4, offset = 0x4, fixed_abs, tag = 'smem constant byte address 0x4 - core index']
  #allocation1 [shape = 'u32[144,128]{1,0:T(1,128)}', space=vmem, size = 0x12000, scoped, tag = 'internal scratch']
  %s0 = inlined_call_operand.vmem [shape: bf16[1024,32], index: 0, kind: input, shape index: {}]
  %s1 = inlined_call_operand.vmem [shape: bf16[32,64], index: 1, kind: input, shape index: {}]
  %s2 = inlined_call_operand.vmem [shape: f32[1,64], index: 2, kind: input, shape index: {}]
  %s3 = inlined_call_operand.vmem [shape: bf16[64,128], index: 3, kind: input, shape index: {}]
  %s4 = inlined_call_operand.vmem [shape: f32[1,128], index: 4, kind: input, shape index: {}]
  %s5 = inlined_call_operand.hbm [shape: f32[1024,128], index: 5, kind: output, shape index: {}]
  %s6 = sld [smem:[#allocation0]]
  $region53: #{tpu_custom_call.1} parent=0
    _
  %s8 = ssub.s32 1, %s6
  %s9 = scalar_select 0, %s8, %s6
  $region1: #{tpu_custom_call.1} parent=0
    #allocation2 [shape = 'u8[524288]{0}', space=vmem, size = 0x80000, scoped, tag = 'output window, operand 0']
    #allocation3 [shape = 's32[2]{0}', space=sflag, size = 0x8, scoped, tag = 'scoped memory for tpu_custom_call.1']
    %10 = vsyncpa [#allocation3], 0
    %s11 = scalar_lea.sflag [#allocation3], 1
    %12 = vsyncpa %s11, 0
    loop: start=0, step=1, limit=4
    $region2: #{tpu_custom_call.1} parent=1 // loop_pre_header
      _
    $region3: #{tpu_custom_call.1} parent=1 // loop_header
      %s14 = sphi 0, %s18
      %p15 = scmp.ge.s32.totalorder %s14, 4
      %s24 = sphi 0, %s26
      %s27 = sphi 0, %s24
      %s28 = sphi 0, %s27
      %s44 = sphi 0, %s28
      %s48 = sphi 0, %s48
      %s50 = sphi 0, %s48
      %s51 = sphi 0, %s50
      %s65 = sphi 0, %s51
      %s69 = sphi 0, %s69
      %s71 = sphi 0, %s69
      %s72 = sphi 0, %s71
      %s86 = sphi 0, %s72
      %s90 = sphi 0, %s90
      %s92 = sphi 0, %s90
      %s93 = sphi 0, %s92
      %s107 = sphi 0, %s93
      %s111 = sphi 0, %s111
      %s113 = sphi 0, %s111
      %s114 = sphi 0, %s113
      %s128 = sphi 0, %s114
      %s134 = sphi 0, %s136
      %s137 = sphi 0, %s134
      %s138 = sphi 0, %s137
      %s154 = sphi 0, %s138
    $region4: #{tpu_custom_call.1} parent=1 // loop_header_branch
      %17 = sbr.rel (%p15) target = $region8
    $region5: #{tpu_custom_call.1} parent=1 // loop_body
      %s19 = ssub.s32 %s14, 1
      %s20 = ssub.s32 %s14, 2
      %s21 = sadd.s32 %s14, 1
      %s22 = ssub.s32 %s14, %s21
      %p23 = scmp.eq.s32.totalorder %s22, 0
      %s25 = sadd.s32 %s24, 1
      %s26 = scalar_select %p23, %s24, %s25
      %p29 = pneg %p23
      %p30 = scmp.eq.s32.totalorder %s14, 1
      %p31 = por %p29, %p30
      %p32 = scmp.ne.s32.totalorder %s24, %s27
      %p33 = scmp.eq.s32.totalorder %s14, 0
      %p34 = por %p32, %p33
      %p35 = scmp.ne.s32.totalorder %s24, %s27
      %p36 = scmp.eq.s32.totalorder %s19, 1
      %p37 = por %p35, %p36
      %p38 = scmp.ne.s32.totalorder %s27, %s28
      %p39 = scmp.eq.s32.totalorder %s19, 0
      %p40 = por %p38, %p39
      %p41 = scmp.ne.s32.totalorder %s27, %s28
      %p42 = scmp.eq.s32.totalorder %s20, 1
      %p43 = por %p41, %p42
      %p45 = scmp.ne.s32.totalorder %s28, %s44
      %p46 = scmp.eq.s32.totalorder %s20, 0
      %p47 = por %p45, %p46
      %s49 = sadd.s32 %s48, 1
      %p52 = scmp.eq.s32.totalorder %s14, 1
      %p53 = scmp.ne.s32.totalorder %s48, %s50
      %p54 = scmp.eq.s32.totalorder %s14, 0
      %p55 = por %p53, %p54
      %p56 = scmp.ne.s32.totalorder %s48, %s50
      %p57 = scmp.eq.s32.totalorder %s19, 1
      %p58 = por %p56, %p57
      %p59 = scmp.ne.s32.totalorder %s50, %s51
      %p60 = scmp.eq.s32.totalorder %s19, 0
      %p61 = por %p59, %p60
      %p62 = scmp.ne.s32.totalorder %s50, %s51
      %p63 = scmp.eq.s32.totalorder %s20, 1
      %p64 = por %p62, %p63
      %p66 = scmp.ne.s32.totalorder %s51, %s65
      %p67 = scmp.eq.s32.totalorder %s20, 0
      %p68 = por %p66, %p67
      %s70 = sadd.s32 %s69, 1
      %p73 = scmp.eq.s32.totalorder %s14, 1
      %p74 = scmp.ne.s32.totalorder %s69, %s71
      %p75 = scmp.eq.s32.totalorder %s14, 0
      %p76 = por %p74, %p75
      %p77 = scmp.ne.s32.totalorder %s69, %s71
      %p78 = scmp.eq.s32.totalorder %s19, 1
      %p79 = por %p77, %p78
      %p80 = scmp.ne.s32.totalorder %s71, %s72
      %p81 = scmp.eq.s32.totalorder %s19, 0
      %p82 = por %p80, %p81
      %p83 = scmp.ne.s32.totalorder %s71, %s72
      %p84 = scmp.eq.s32.totalorder %s20, 1
      %p85 = por %p83, %p84
      %p87 = scmp.ne.s32.totalorder %s72, %s86
      %p88 = scmp.eq.s32.totalorder %s20, 0
      %p89 = por %p87, %p88
      %s91 = sadd.s32 %s90, 1
      %p94 = scmp.eq.s32.totalorder %s14, 1
      %p95 = scmp.ne.s32.totalorder %s90, %s92
      %p96 = scmp.eq.s32.totalorder %s14, 0
      %p97 = por %p95, %p96
      %p98 = scmp.ne.s32.totalorder %s90, %s92
      %p99 = scmp.eq.s32.totalorder %s19, 1
      %p100 = por %p98, %p99
      %p101 = scmp.ne.s32.totalorder %s92, %s93
      %p102 = scmp.eq.s32.totalorder %s19, 0
      %p103 = por %p101, %p102
      %p104 = scmp.ne.s32.totalorder %s92, %s93
      %p105 = scmp.eq.s32.totalorder %s20, 1
      %p106 = por %p104, %p105
      %p108 = scmp.ne.s32.totalorder %s93, %s107
      %p109 = scmp.eq.s32.totalorder %s20, 0
      %p110 = por %p108, %p109
      %s112 = sadd.s32 %s111, 1
      %p115 = scmp.eq.s32.totalorder %s14, 1
      %p116 = scmp.ne.s32.totalorder %s111, %s113
      %p117 = scmp.eq.s32.totalorder %s14, 0
      %p118 = por %p116, %p117
      %p119 = scmp.ne.s32.totalorder %s111, %s113
      %p120 = scmp.eq.s32.totalorder %s19, 1
      %p121 = por %p119, %p120
      %p122 = scmp.ne.s32.totalorder %s113, %s114
      %p123 = scmp.eq.s32.totalorder %s19, 0
      %p124 = por %p122, %p123
      %p125 = scmp.ne.s32.totalorder %s113, %s114
      %p126 = scmp.eq.s32.totalorder %s20, 1
      %p127 = por %p125, %p126
      %p129 = scmp.ne.s32.totalorder %s114, %s128
      %p130 = scmp.eq.s32.totalorder %s20, 0
      %p131 = por %p129, %p130
      %s132 = ssub.s32 %s14, %s21
      %p133 = scmp.eq.s32.totalorder %s132, 0
      %s135 = sadd.s32 %s134, 1
      %s136 = scalar_select %p133, %s134, %s135
      %p139 = pneg %p133
      %p140 = scmp.eq.s32.totalorder %s14, 1
      %p141 = por %p139, %p140
      %p142 = scmp.ne.s32.totalorder %s134, %s137
      %p143 = scmp.eq.s32.totalorder %s14, 0
      %p144 = por %p142, %p143
      %p145 = scmp.ne.s32.totalorder %s134, %s137
      %p146 = scmp.eq.s32.totalorder %s19, 1
      %p147 = por %p145, %p146
      %p148 = scmp.ne.s32.totalorder %s137, %s138
      %p149 = scmp.eq.s32.totalorder %s19, 0
      %p150 = por %p148, %p149
      %p151 = scmp.ne.s32.totalorder %s137, %s138
      %p152 = scmp.eq.s32.totalorder %s20, 1
      %p153 = por %p151, %p152
      %p155 = scmp.ne.s32.totalorder %s138, %s154
      %p156 = scmp.eq.s32.totalorder %s20, 0
      %p157 = por %p155, %p156
      %p158 = scmp.le.s32.totalorder 1, %s14
      %p159 = scmp.lt.s32.totalorder %s14, 3
      %p160 = pnand %p158, %p159
      %p161 = pneg %p160
      // Predicated region
      $region9: #{tpu_custom_call.1} parent=5 // pred_check
        _
      $region10: #{tpu_custom_call.1} parent=5 // pred_check_branch
        %163 = sbr.rel (%p160) target = $region12
      $region11: #{tpu_custom_call.1} parent=5 // pred_region
        %s164 = ssub.s32 %s14, 1
        // Predicated region
        $region13: #{tpu_custom_call.1} parent=11 // pred_check
          %p165 = pneg %p61
        $region14: #{tpu_custom_call.1} parent=11 // pred_check_branch
          %167 = sbr.rel (%p165) target = $region16
        $region15: #{tpu_custom_call.1} parent=11 // pred_region
          _
        $region16: #{tpu_custom_call.1} parent=11 // pred_fallthru
          _
        // Predicated region
        $region17: #{tpu_custom_call.1} parent=11 // pred_check
          %p168 = pneg %p82
        $region18: #{tpu_custom_call.1} parent=11 // pred_check_branch
          %170 = sbr.rel (%p168) target = $region20
        $region19: #{tpu_custom_call.1} parent=11 // pred_region
          _
        $region20: #{tpu_custom_call.1} parent=11 // pred_fallthru
          _
        // Predicated region
        $region21: #{tpu_custom_call.1} parent=11 // pred_check
          %p171 = pneg %p103
        $region22: #{tpu_custom_call.1} parent=11 // pred_check_branch
          %173 = sbr.rel (%p171) target = $region24
        $region23: #{tpu_custom_call.1} parent=11 // pred_region
          _
        $region24: #{tpu_custom_call.1} parent=11 // pred_fallthru
          _
        // Predicated region
        $region25: #{tpu_custom_call.1} parent=11 // pred_check
          %p174 = pneg %p124
        $region26: #{tpu_custom_call.1} parent=11 // pred_check_branch
          %176 = sbr.rel (%p174) target = $region28
        $region27: #{tpu_custom_call.1} parent=11 // pred_region
          _
        $region28: #{tpu_custom_call.1} parent=11 // pred_fallthru
          _
      $region12: #{tpu_custom_call.1} parent=5 // pred_fallthru
        _
      %p177 = scmp.lt.s32.totalorder %s14, 2
      // Predicated region
      $region29: #{tpu_custom_call.1} parent=5 // pred_check
        %p178 = pneg %p177
      $region30: #{tpu_custom_call.1} parent=5 // pred_check_branch
        %180 = sbr.rel (%p178) target = $region32
      $region31: #{tpu_custom_call.1} parent=5 // pred_region
        // Predicated region
        $region33: #{tpu_custom_call.1} parent=31 // pred_check
          %p181 = pneg %p34
        $region34: #{tpu_custom_call.1} parent=31 // pred_check_branch
          %183 = sbr.rel (%p181) target = $region36
        $region35: #{tpu_custom_call.1} parent=31 // pred_region
          %s184 = smul.u32 64, %s14
          %p185 = scmp.lt.s32.totalorder %s184, 127
          %s186 = scalar_select %p185, %s184, 127
          %s187 = smul.addr %s186, 4
          %s188 = scalar_lea.vmem %s0, %s187
          %s189 = smul.u32 64, %s14
        $region36: #{tpu_custom_call.1} parent=31 // pred_fallthru
          _
      $region32: #{tpu_custom_call.1} parent=5 // pred_fallthru
        _
      %p190 = scmp.le.s32.totalorder 1, %s14
      %p191 = scmp.lt.s32.totalorder %s14, 3
      %p192 = pnand %p190, %p191
      %p193 = pneg %p192
      // Predicated region
      $region37: #{tpu_custom_call.1} parent=5 // pred_check
        _
      $region38: #{tpu_custom_call.1} parent=5 // pred_check_branch
        %195 = sbr.rel (%p192) target = $region40
      $region39: #{tpu_custom_call.1} parent=5 // pred_region
        %s196 = ssub.s32 %s14, 1
        %s197 = smul.u32 64, %s19
        %p198 = scmp.lt.s32.totalorder %s197, 127
        %s199 = scalar_select %p198, %s197, 127
        %s200 = smul.addr %s199, 4
        %s201 = scalar_lea.vmem %s0, %s200
        %p202 = pneg %p40
        %p203 = pneg %p37
        %p204 = pneg %p61
        %p205 = pneg %p58
        %p206 = pneg %p82
        %p207 = pneg %p79
        %p208 = pneg %p103
        %p209 = pneg %p100
        %p210 = pneg %p124
        %p211 = pneg %p121
        %p212 = pneg %p150
        %p213 = pneg %p147
        %s214 = sand.u32 %s137, 1
        %s215 = scalar_lea.sflag [#allocation3], %s214
        %s216 = sand.u32 %s137, 1
        %s217 = smul.addr %s216, 512
        %s218 = scalar_lea.vmem [#allocation2], %s217
        %s219 = smul.u32 64, %s19
        %p220 = scmp.lt.s32.totalorder %s219, 127
        %s221 = scalar_select %p220, %s219, 127
        %s222 = smul.addr %s221, 4
        %s223 = scalar_lea.vmem %s0, %s222
        %s224 = smul.u32 64, %s19
        %s225 = smul.u32 64, %s19
        %v227 = vld [vmem:[%s223] sm:$0xf]
        %v228 = vld [vmem:[%s223 + $0x4] sm:$0xf]
        %v229 = vld [vmem:[%s223 + $0x8] sm:$0xf]
        %v230 = vld [vmem:[%s223 + $0xc] sm:$0xf]
        %v231 = vld [vmem:[%s223 + $0x10] sm:$0xf]
        %v232 = vld [vmem:[%s223 + $0x14] sm:$0xf]
        %v233 = vld [vmem:[%s223 + $0x18] sm:$0xf]
        %v234 = vld [vmem:[%s223 + $0x1c] sm:$0xf]
        %v235 = vld [vmem:[%s223 + $0x20] sm:$0xf]
        %v236 = vld [vmem:[%s223 + $0x24] sm:$0xf]
        %v237 = vld [vmem:[%s223 + $0x28] sm:$0xf]
        %v238 = vld [vmem:[%s223 + $0x2c] sm:$0xf]
        %v239 = vld [vmem:[%s223 + $0x30] sm:$0xf]
        %v240 = vld [vmem:[%s223 + $0x34] sm:$0xf]
        %v241 = vld [vmem:[%s223 + $0x38] sm:$0xf]
        %v242 = vld [vmem:[%s223 + $0x3c] sm:$0xf]
        %v243 = vld [vmem:[%s223 + $0x40] sm:$0xf]
        %v244 = vld [vmem:[%s223 + $0x44] sm:$0xf]
        %v245 = vld [vmem:[%s223 + $0x48] sm:$0xf]
        %v246 = vld [vmem:[%s223 + $0x4c] sm:$0xf]
        %v247 = vld [vmem:[%s223 + $0x50] sm:$0xf]
        %v248 = vld [vmem:[%s223 + $0x54] sm:$0xf]
        %v249 = vld [vmem:[%s223 + $0x58] sm:$0xf]
        %v250 = vld [vmem:[%s223 + $0x5c] sm:$0xf]
        %v251 = vld [vmem:[%s223 + $0x60] sm:$0xf]
        %v252 = vld [vmem:[%s223 + $0x64] sm:$0xf]
        %v253 = vld [vmem:[%s223 + $0x68] sm:$0xf]
        %v254 = vld [vmem:[%s223 + $0x6c] sm:$0xf]
        %v255 = vld [vmem:[%s223 + $0x70] sm:$0xf]
        %v256 = vld [vmem:[%s223 + $0x74] sm:$0xf]
        %v257 = vld [vmem:[%s223 + $0x78] sm:$0xf]
        %v258 = vld [vmem:[%s223 + $0x7c] sm:$0xf]
        %v259 = vld [vmem:[%s223 + $0x80] sm:$0xf]
        %v260 = vld [vmem:[%s223 + $0x84] sm:$0xf]
        %v261 = vld [vmem:[%s223 + $0x88] sm:$0xf]
        %v262 = vld [vmem:[%s223 + $0x8c] sm:$0xf]
        %v263 = vld [vmem:[%s223 + $0x90] sm:$0xf]
        %v264 = vld [vmem:[%s223 + $0x94] sm:$0xf]
        %v265 = vld [vmem:[%s223 + $0x98] sm:$0xf]
        %v266 = vld [vmem:[%s223 + $0x9c] sm:$0xf]
        %v267 = vld [vmem:[%s223 + $0xa0] sm:$0xf]
        %v268 = vld [vmem:[%s223 + $0xa4] sm:$0xf]
        %v269 = vld [vmem:[%s223 + $0xa8] sm:$0xf]
        %v270 = vld [vmem:[%s223 + $0xac] sm:$0xf]
        %v271 = vld [vmem:[%s223 + $0xb0] sm:$0xf]
        %v272 = vld [vmem:[%s223 + $0xb4] sm:$0xf]
        %v273 = vld [vmem:[%s223 + $0xb8] sm:$0xf]
        %v274 = vld [vmem:[%s223 + $0xbc] sm:$0xf]
        %v275 = vld [vmem:[%s223 + $0xc0] sm:$0xf]
        %v276 = vld [vmem:[%s223 + $0xc4] sm:$0xf]
        %v277 = vld [vmem:[%s223 + $0xc8] sm:$0xf]
        %v278 = vld [vmem:[%s223 + $0xcc] sm:$0xf]
        %v279 = vld [vmem:[%s223 + $0xd0] sm:$0xf]
        %v280 = vld [vmem:[%s223 + $0xd4] sm:$0xf]
        %v281 = vld [vmem:[%s223 + $0xd8] sm:$0xf]
        %v282 = vld [vmem:[%s223 + $0xdc] sm:$0xf]
        %v283 = vld [vmem:[%s223 + $0xe0] sm:$0xf]
        %v284 = vld [vmem:[%s223 + $0xe4] sm:$0xf]
        %v285 = vld [vmem:[%s223 + $0xe8] sm:$0xf]
        %v286 = vld [vmem:[%s223 + $0xec] sm:$0xf]
        %v287 = vld [vmem:[%s223 + $0xf0] sm:$0xf]
        %v288 = vld [vmem:[%s223 + $0xf4] sm:$0xf]
        %v289 = vld [vmem:[%s223 + $0xf8] sm:$0xf]
        %v290 = vld [vmem:[%s223 + $0xfc] sm:$0xf]
        %v291 = vld [vmem:[%s1] sm:$0xf]
        %v292 = vld [vmem:[%s1 + $0x4] sm:$0xf]
        %v293 = vld [vmem:[%s1 + $0x8] sm:$0xf]
        %v294 = vld [vmem:[%s1 + $0xc] sm:$0xf]
        %v295 = vld [vmem:[%s2] sm:$0x1]
        %v297 = vlaneseq
        %v298 = vshrl.u32 %v297, 7
        %v299 = vsub.s32 0, %v298
        %v300 = vrot.slane %v295, %v299
        %v366 = vunpack.c.l.b16 %v227
        %v367 = vunpack.c.l.b16 %v228
        %v368 = vunpack.c.l.b16 %v229
        %v369 = vunpack.c.l.b16 %v230
        %v370 = vunpack.c.l.b16 %v231
        %v371 = vunpack.c.l.b16 %v232
        %v372 = vunpack.c.l.b16 %v233
        %v373 = vunpack.c.l.b16 %v234
        %v374 = vunpack.c.l.b16 %v235
        %v375 = vunpack.c.l.b16 %v236
        %v376 = vunpack.c.l.b16 %v237
        %v377 = vunpack.c.l.b16 %v238
        %v378 = vunpack.c.l.b16 %v239
        %v379 = vunpack.c.l.b16 %v240
        %v380 = vunpack.c.l.b16 %v241
        %v381 = vunpack.c.l.b16 %v242
        %v382 = vunpack.c.l.b16 %v243
        %v383 = vunpack.c.l.b16 %v244
        %v384 = vunpack.c.l.b16 %v245
        %v385 = vunpack.c.l.b16 %v246
        %v386 = vunpack.c.l.b16 %v247
        %v387 = vunpack.c.l.b16 %v248
        %v388 = vunpack.c.l.b16 %v249
        %v389 = vunpack.c.l.b16 %v250
        %v390 = vunpack.c.l.b16 %v251
        %v391 = vunpack.c.l.b16 %v252
        %v392 = vunpack.c.l.b16 %v253
        %v393 = vunpack.c.l.b16 %v254
        %v394 = vunpack.c.l.b16 %v255
        %v395 = vunpack.c.l.b16 %v256
        %v396 = vunpack.c.l.b16 %v257
        %v397 = vunpack.c.l.b16 %v258
        %v398 = vunpack.c.l.b16 %v259
        %v399 = vunpack.c.l.b16 %v260
        %v400 = vunpack.c.l.b16 %v261
        %v401 = vunpack.c.l.b16 %v262
        %v402 = vunpack.c.l.b16 %v263
        %v403 = vunpack.c.l.b16 %v264
        %v404 = vunpack.c.l.b16 %v265
        %v405 = vunpack.c.l.b16 %v266
        %v406 = vunpack.c.l.b16 %v267
        %v407 = vunpack.c.l.b16 %v268
        %v408 = vunpack.c.l.b16 %v269
        %v409 = vunpack.c.l.b16 %v270
        %v410 = vunpack.c.l.b16 %v271
        %v411 = vunpack.c.l.b16 %v272
        %v412 = vunpack.c.l.b16 %v273
        %v413 = vunpack.c.l.b16 %v274
        %v414 = vunpack.c.l.b16 %v275
        %v415 = vunpack.c.l.b16 %v276
        %v416 = vunpack.c.l.b16 %v277
        %v417 = vunpack.c.l.b16 %v278
        %v418 = vunpack.c.l.b16 %v279
        %v419 = vunpack.c.l.b16 %v280
        %v420 = vunpack.c.l.b16 %v281
        %v421 = vunpack.c.l.b16 %v282
        %v422 = vunpack.c.l.b16 %v283
        %v423 = vunpack.c.l.b16 %v284
        %v424 = vunpack.c.l.b16 %v285
        %v425 = vunpack.c.l.b16 %v286
        %v426 = vunpack.c.l.b16 %v287
        %v427 = vunpack.c.l.b16 %v288
        %v428 = vunpack.c.l.b16 %v289
        %v429 = vunpack.c.l.b16 %v290
        %v430 = vpack.c.b16 %v367, %v366
        %v431 = vpack.c.b16 %v369, %v368
        %v432 = vpack.c.b16 %v371, %v370
        %v433 = vpack.c.b16 %v373, %v372
        %v434 = vpack.c.b16 %v375, %v374
        %v435 = vpack.c.b16 %v377, %v376
        %v436 = vpack.c.b16 %v379, %v378
        %v437 = vpack.c.b16 %v381, %v380
        %v438 = vpack.c.b16 %v383, %v382
        %v439 = vpack.c.b16 %v385, %v384
        %v440 = vpack.c.b16 %v387, %v386
        %v441 = vpack.c.b16 %v389, %v388
        %v442 = vpack.c.b16 %v391, %v390
        %v443 = vpack.c.b16 %v393, %v392
        %v444 = vpack.c.b16 %v395, %v394
        %v445 = vpack.c.b16 %v397, %v396
        %v446 = vpack.c.b16 %v399, %v398
        %v447 = vpack.c.b16 %v401, %v400
        %v448 = vpack.c.b16 %v403, %v402
        %v449 = vpack.c.b16 %v405, %v404
        %v450 = vpack.c.b16 %v407, %v406
        %v451 = vpack.c.b16 %v409, %v408
        %v452 = vpack.c.b16 %v411, %v410
        %v453 = vpack.c.b16 %v413, %v412
        %v454 = vpack.c.b16 %v415, %v414
        %v455 = vpack.c.b16 %v417, %v416
        %v456 = vpack.c.b16 %v419, %v418
        %v457 = vpack.c.b16 %v421, %v420
        %v458 = vpack.c.b16 %v423, %v422
        %v459 = vpack.c.b16 %v425, %v424
        %v460 = vpack.c.b16 %v427, %v426
        %v461 = vpack.c.b16 %v429, %v428
        %v466 = vunpack.c.l.b16 %v291
        %v467 = vunpack.c.l.b16 %v292
        %v468 = vunpack.c.l.b16 %v293
        %v469 = vunpack.c.l.b16 %v294
        %v470 = vpack.c.b16 %v467, %v466
        %v471 = vpack.c.b16 %v469, %v468
        %vm474 = vcmask 261120
        %v476 = vsel %vm474, %v430, 0
        %v479 = vsel %vm474, %v431, 0
        %v482 = vsel %vm474, %v432, 0
        %v485 = vsel %vm474, %v433, 0
        %v488 = vsel %vm474, %v434, 0
        %v491 = vsel %vm474, %v435, 0
        %v494 = vsel %vm474, %v436, 0
        %v497 = vsel %vm474, %v437, 0
        %v500 = vsel %vm474, %v438, 0
        %v503 = vsel %vm474, %v439, 0
        %v506 = vsel %vm474, %v440, 0
        %v509 = vsel %vm474, %v441, 0
        %v512 = vsel %vm474, %v442, 0
        %v515 = vsel %vm474, %v443, 0
        %v518 = vsel %vm474, %v444, 0
        %v521 = vsel %vm474, %v445, 0
        %v524 = vsel %vm474, %v446, 0
        %v527 = vsel %vm474, %v447, 0
        %v530 = vsel %vm474, %v448, 0
        %v533 = vsel %vm474, %v449, 0
        %v536 = vsel %vm474, %v450, 0
        %v539 = vsel %vm474, %v451, 0
        %v542 = vsel %vm474, %v452, 0
        %v545 = vsel %vm474, %v453, 0
        %v548 = vsel %vm474, %v454, 0
        %v551 = vsel %vm474, %v455, 0
        %v554 = vsel %vm474, %v456, 0
        %v557 = vsel %vm474, %v457, 0
        %v560 = vsel %vm474, %v458, 0
        %v563 = vsel %vm474, %v459, 0
        %v566 = vsel %vm474, %v460, 0
        %v569 = vsel %vm474, %v461, 0
        %571 = vmatprep.subr.bf16.mxu0 0
        %572 = vmatpush1.bf16.msra.mxu0 0
        %573 = vmatprep.subr.bf16.mxu0 0
        %574 = vmatpush1.bf16.msra.mxu0 0
        %575 = vmatprep.subr.bf16.mxu0 0
        %576 = vmatpush1.bf16.msra.mxu0 0
        %577 = vmatprep.subr.bf16.mxu0 0
        %578 = vmatpush1.bf16.msra.mxu0 0
        %579 = vmatprep.subr.bf16.mxu0 0
        %580 = vmatpush1.bf16.msra.mxu0 0
        %581 = vmatprep.subr.bf16.mxu0 0
        %582 = vmatpush1.bf16.msra.mxu0 0
        %583 = vmatprep.subr.bf16.mxu0 0
        %584 = vmatpush1.bf16.msra.mxu0 %v471
        %585 = vmatprep.subr.bf16.mxu0 0
        %586 = vmatpush1.bf16.msra.mxu0 %v470
        %587 = vmatprep.subr.bf16.mxu0 0
        %588 = vmatpush2.bf16.msra.mxu0 0
        %589 = vmatprep.subr.bf16.mxu0 0
        %590 = vmatpush2.bf16.msra.mxu0 0
        %591 = vmatprep.subr.bf16.mxu0 0
        %592 = vmatpush2.bf16.msra.mxu0 0
        %593 = vmatprep.subr.bf16.mxu0 0
        %594 = vmatpush2.bf16.msra.mxu0 0
        %595 = vmatprep.subr.bf16.mxu0 0
        %596 = vmatpush2.bf16.msra.mxu0 0
        %597 = vmatprep.subr.bf16.mxu0 0
        %598 = vmatpush2.bf16.msra.mxu0 0
        %599 = vmatprep.subr.bf16.mxu0 0
        %600 = vmatpush2.bf16.msra.mxu0 0
        %601 = vmatprep.subr.bf16.mxu0 0
        %602 = vmatpush2.bf16.msra.mxu0 0
        %603 = vmatprep.mubr.bf16.mxu0 0
        %604 = vmatmul.mubr.bf16.gmra.mxu0 %v476
        %v605 = vpop.f32.mrf.mxu0
        %v606 = vadd.f32 %v300, %v605
        %v607 = vpop.f32.mrf.mxu0
        %v608 = vpop.f32.mrf.mxu0
        %v609 = vadd.f32 %v300, %v608
        %v610 = vpop.f32.mrf.mxu0
        %611 = vmatprep.mubr.bf16.mxu0 0
        %612 = vmatmul.mubr.bf16.gmra.mxu0 %v479
        %v613 = vpop.f32.mrf.mxu0
        %v614 = vadd.f32 %v300, %v613
        %v615 = vpop.f32.mrf.mxu0
        %v616 = vpop.f32.mrf.mxu0
        %v617 = vadd.f32 %v300, %v616
        %v618 = vpop.f32.mrf.mxu0
        %619 = vmatprep.mubr.bf16.mxu0 0
        %620 = vmatmul.mubr.bf16.gmra.mxu0 %v482
        %v621 = vpop.f32.mrf.mxu0
        %v622 = vadd.f32 %v300, %v621
        %v623 = vpop.f32.mrf.mxu0
        %v624 = vpop.f32.mrf.mxu0
        %v625 = vadd.f32 %v300, %v624
        %v626 = vpop.f32.mrf.mxu0
        %627 = vmatprep.mubr.bf16.mxu0 0
        %628 = vmatmul.mubr.bf16.gmra.mxu0 %v485
        %v629 = vpop.f32.mrf.mxu0
        %v630 = vadd.f32 %v300, %v629
        %v631 = vpop.f32.mrf.mxu0
        %v632 = vpop.f32.mrf.mxu0
        %v633 = vadd.f32 %v300, %v632
        %v634 = vpop.f32.mrf.mxu0
        %635 = vmatprep.mubr.bf16.mxu0 0
        %636 = vmatmul.mubr.bf16.gmra.mxu0 %v488
        %v637 = vpop.f32.mrf.mxu0
        %v638 = vadd.f32 %v300, %v637
        %v639 = vpop.f32.mrf.mxu0
        %v640 = vpop.f32.mrf.mxu0
        %v641 = vadd.f32 %v300, %v640
        %v642 = vpop.f32.mrf.mxu0
        %643 = vmatprep.mubr.bf16.mxu0 0
        %644 = vmatmul.mubr.bf16.gmra.mxu0 %v491
        %v645 = vpop.f32.mrf.mxu0
        %v646 = vadd.f32 %v300, %v645
        %v647 = vpop.f32.mrf.mxu0
        %v648 = vpop.f32.mrf.mxu0
        %v649 = vadd.f32 %v300, %v648
        %v650 = vpop.f32.mrf.mxu0
        %651 = vmatprep.mubr.bf16.mxu0 0
        %652 = vmatmul.mubr.bf16.gmra.mxu0 %v494
        %v653 = vpop.f32.mrf.mxu0
        %v654 = vadd.f32 %v300, %v653
        %v655 = vpop.f32.mrf.mxu0
        %v656 = vpop.f32.mrf.mxu0
        %v657 = vadd.f32 %v300, %v656
        %v658 = vpop.f32.mrf.mxu0
        %659 = vmatprep.mubr.bf16.mxu0 0
        %660 = vmatmul.mubr.bf16.gmra.mxu0 %v497
        %v661 = vpop.f32.mrf.mxu0
        %v662 = vadd.f32 %v300, %v661
        %v663 = vpop.f32.mrf.mxu0
        %v664 = vpop.f32.mrf.mxu0
        %v665 = vadd.f32 %v300, %v664
        %v666 = vpop.f32.mrf.mxu0
        %667 = vmatprep.mubr.bf16.mxu0 0
        %668 = vmatmul.mubr.bf16.gmra.mxu0 %v500
        %v669 = vpop.f32.mrf.mxu0
        %v670 = vadd.f32 %v300, %v669
        %v671 = vpop.f32.mrf.mxu0
        %v672 = vpop.f32.mrf.mxu0
        %v673 = vadd.f32 %v300, %v672
        %v674 = vpop.f32.mrf.mxu0
        %675 = vmatprep.mubr.bf16.mxu0 0
        %676 = vmatmul.mubr.bf16.gmra.mxu0 %v503
        %v677 = vpop.f32.mrf.mxu0
        %v678 = vadd.f32 %v300, %v677
        %v679 = vpop.f32.mrf.mxu0
        %v680 = vpop.f32.mrf.mxu0
        %v681 = vadd.f32 %v300, %v680
        %v682 = vpop.f32.mrf.mxu0
        %683 = vmatprep.mubr.bf16.mxu0 0
        %684 = vmatmul.mubr.bf16.gmra.mxu0 %v506
        %v685 = vpop.f32.mrf.mxu0
        %v686 = vadd.f32 %v300, %v685
        %v687 = vpop.f32.mrf.mxu0
        %v688 = vpop.f32.mrf.mxu0
        %v689 = vadd.f32 %v300, %v688
        %v690 = vpop.f32.mrf.mxu0
        %691 = vmatprep.mubr.bf16.mxu0 0
        %692 = vmatmul.mubr.bf16.gmra.mxu0 %v509
        %v693 = vpop.f32.mrf.mxu0
        %v694 = vadd.f32 %v300, %v693
        %v695 = vpop.f32.mrf.mxu0
        %v696 = vpop.f32.mrf.mxu0
        %v697 = vadd.f32 %v300, %v696
        %v698 = vpop.f32.mrf.mxu0
        %699 = vmatprep.mubr.bf16.mxu0 0
        %700 = vmatmul.mubr.bf16.gmra.mxu0 %v512
        %v701 = vpop.f32.mrf.mxu0
        %v702 = vadd.f32 %v300, %v701
        %v703 = vpop.f32.mrf.mxu0
        %v704 = vpop.f32.mrf.mxu0
        %v705 = vadd.f32 %v300, %v704
        %v706 = vpop.f32.mrf.mxu0
        %707 = vmatprep.mubr.bf16.mxu0 0
        %708 = vmatmul.mubr.bf16.gmra.mxu0 %v515
        %v709 = vpop.f32.mrf.mxu0
        %v710 = vadd.f32 %v300, %v709
        %v711 = vpop.f32.mrf.mxu0
        %v712 = vpop.f32.mrf.mxu0
        %v713 = vadd.f32 %v300, %v712
        %v714 = vpop.f32.mrf.mxu0
        %715 = vmatprep.mubr.bf16.mxu0 0
        %716 = vmatmul.mubr.bf16.gmra.mxu0 %v518
        %v717 = vpop.f32.mrf.mxu0
        %v718 = vadd.f32 %v300, %v717
        %v719 = vpop.f32.mrf.mxu0
        %v720 = vpop.f32.mrf.mxu0
        %v721 = vadd.f32 %v300, %v720
        %v722 = vpop.f32.mrf.mxu0
        %723 = vmatprep.mubr.bf16.mxu0 0
        %724 = vmatmul.mubr.bf16.gmra.mxu0 %v521
        %v725 = vpop.f32.mrf.mxu0
        %v726 = vadd.f32 %v300, %v725
        %v727 = vpop.f32.mrf.mxu0
        %v728 = vpop.f32.mrf.mxu0
        %v729 = vadd.f32 %v300, %v728
        %v730 = vpop.f32.mrf.mxu0
        %731 = vmatprep.mubr.bf16.mxu0 0
        %732 = vmatmul.mubr.bf16.gmra.mxu0 %v524
        %v733 = vpop.f32.mrf.mxu0
        %v734 = vadd.f32 %v300, %v733
        %v735 = vpop.f32.mrf.mxu0
        %v736 = vpop.f32.mrf.mxu0
        %v737 = vadd.f32 %v300, %v736
        %v738 = vpop.f32.mrf.mxu0
        %739 = vmatprep.mubr.bf16.mxu0 0
        %740 = vmatmul.mubr.bf16.gmra.mxu0 %v527
        %v741 = vpop.f32.mrf.mxu0
        %v742 = vadd.f32 %v300, %v741
        %v743 = vpop.f32.mrf.mxu0
        %v744 = vpop.f32.mrf.mxu0
        %v745 = vadd.f32 %v300, %v744
        %v746 = vpop.f32.mrf.mxu0
        %747 = vmatprep.mubr.bf16.mxu0 0
        %748 = vmatmul.mubr.bf16.gmra.mxu0 %v530
        %v749 = vpop.f32.mrf.mxu0
        %v750 = vadd.f32 %v300, %v749
        %v751 = vpop.f32.mrf.mxu0
        %v752 = vpop.f32.mrf.mxu0
        %v753 = vadd.f32 %v300, %v752
        %v754 = vpop.f32.mrf.mxu0
        %755 = vmatprep.mubr.bf16.mxu0 0
        %756 = vmatmul.mubr.bf16.gmra.mxu0 %v533
        %v757 = vpop.f32.mrf.mxu0
        %v758 = vadd.f32 %v300, %v757
        %v759 = vpop.f32.mrf.mxu0
        %v760 = vpop.f32.mrf.mxu0
        %v761 = vadd.f32 %v300, %v760
        %v762 = vpop.f32.mrf.mxu0
        %763 = vmatprep.mubr.bf16.mxu0 0
        %764 = vmatmul.mubr.bf16.gmra.mxu0 %v536
        %v765 = vpop.f32.mrf.mxu0
        %v766 = vadd.f32 %v300, %v765
        %v767 = vpop.f32.mrf.mxu0
        %v768 = vpop.f32.mrf.mxu0
        %v769 = vadd.f32 %v300, %v768
        %v770 = vpop.f32.mrf.mxu0
        %771 = vmatprep.mubr.bf16.mxu0 0
        %772 = vmatmul.mubr.bf16.gmra.mxu0 %v539
        %v773 = vpop.f32.mrf.mxu0
        %v774 = vadd.f32 %v300, %v773
        %v775 = vpop.f32.mrf.mxu0
        %v776 = vpop.f32.mrf.mxu0
        %v777 = vadd.f32 %v300, %v776
        %v778 = vpop.f32.mrf.mxu0
        %779 = vmatprep.mubr.bf16.mxu0 0
        %780 = vmatmul.mubr.bf16.gmra.mxu0 %v542
        %v781 = vpop.f32.mrf.mxu0
        %v782 = vadd.f32 %v300, %v781
        %v783 = vpop.f32.mrf.mxu0
        %v784 = vpop.f32.mrf.mxu0
        %v785 = vadd.f32 %v300, %v784
        %v786 = vpop.f32.mrf.mxu0
        %787 = vmatprep.mubr.bf16.mxu0 0
        %788 = vmatmul.mubr.bf16.gmra.mxu0 %v545
        %v789 = vpop.f32.mrf.mxu0
        %v790 = vadd.f32 %v300, %v789
        %v791 = vpop.f32.mrf.mxu0
        %v792 = vpop.f32.mrf.mxu0
        %v793 = vadd.f32 %v300, %v792
        %v794 = vpop.f32.mrf.mxu0
        %795 = vmatprep.mubr.bf16.mxu0 0
        %796 = vmatmul.mubr.bf16.gmra.mxu0 %v548
        %v797 = vpop.f32.mrf.mxu0
        %v798 = vadd.f32 %v300, %v797
        %v799 = vpop.f32.mrf.mxu0
        %v800 = vpop.f32.mrf.mxu0
        %v801 = vadd.f32 %v300, %v800
        %v802 = vpop.f32.mrf.mxu0
        %803 = vmatprep.mubr.bf16.mxu0 0
        %804 = vmatmul.mubr.bf16.gmra.mxu0 %v551
        %v805 = vpop.f32.mrf.mxu0
        %v806 = vadd.f32 %v300, %v805
        %v807 = vpop.f32.mrf.mxu0
        %v808 = vpop.f32.mrf.mxu0
        %v809 = vadd.f32 %v300, %v808
        %v810 = vpop.f32.mrf.mxu0
        %811 = vmatprep.mubr.bf16.mxu0 0
        %812 = vmatmul.mubr.bf16.gmra.mxu0 %v554
        %v813 = vpop.f32.mrf.mxu0
        %v814 = vadd.f32 %v300, %v813
        %v815 = vpop.f32.mrf.mxu0
        %v816 = vpop.f32.mrf.mxu0
        %v817 = vadd.f32 %v300, %v816
        %v818 = vpop.f32.mrf.mxu0
        %819 = vmatprep.mubr.bf16.mxu0 0
        %820 = vmatmul.mubr.bf16.gmra.mxu0 %v557
        %v821 = vpop.f32.mrf.mxu0
        %v822 = vadd.f32 %v300, %v821
        %v823 = vpop.f32.mrf.mxu0
        %v824 = vpop.f32.mrf.mxu0
        %v825 = vadd.f32 %v300, %v824
        %v826 = vpop.f32.mrf.mxu0
        %827 = vmatprep.mubr.bf16.mxu0 0
        %828 = vmatmul.mubr.bf16.gmra.mxu0 %v560
        %v829 = vpop.f32.mrf.mxu0
        %v830 = vadd.f32 %v300, %v829
        %v831 = vpop.f32.mrf.mxu0
        %v832 = vpop.f32.mrf.mxu0
        %v833 = vadd.f32 %v300, %v832
        %v834 = vpop.f32.mrf.mxu0
        %835 = vmatprep.mubr.bf16.mxu0 0
        %836 = vmatmul.mubr.bf16.gmra.mxu0 %v563
        %v837 = vpop.f32.mrf.mxu0
        %v838 = vadd.f32 %v300, %v837
        %v839 = vpop.f32.mrf.mxu0
        %v840 = vpop.f32.mrf.mxu0
        %v841 = vadd.f32 %v300, %v840
        %v842 = vpop.f32.mrf.mxu0
        %843 = vmatprep.mubr.bf16.mxu0 0
        %844 = vmatmul.mubr.bf16.gmra.mxu0 %v566
        %v845 = vpop.f32.mrf.mxu0
        %v846 = vadd.f32 %v300, %v845
        %v847 = vpop.f32.mrf.mxu0
        %v848 = vpop.f32.mrf.mxu0
        %v849 = vadd.f32 %v300, %v848
        %v850 = vpop.f32.mrf.mxu0
        %851 = vmatprep.mubr.bf16.mxu0 0
        %852 = vmatmul.mubr.bf16.gmra.mxu0 %v569
        %v853 = vpop.f32.mrf.mxu0
        %v854 = vadd.f32 %v300, %v853
        %v855 = vpop.f32.mrf.mxu0
        %v856 = vpop.f32.mrf.mxu0
        %v857 = vadd.f32 %v300, %v856
        %v858 = vpop.f32.mrf.mxu0
        %859 = vdwg.mxu0
        %v860 = vmax.f32 %v606, 0.0
        %v861 = vmax.f32 %v609, 0.0
        %v862 = vmax.f32 %v614, 0.0
        %v863 = vmax.f32 %v617, 0.0
        %v864 = vmax.f32 %v622, 0.0
        %v865 = vmax.f32 %v625, 0.0
        %v866 = vmax.f32 %v630, 0.0
        %v867 = vmax.f32 %v633, 0.0
        %v868 = vmax.f32 %v638, 0.0
        %v869 = vmax.f32 %v641, 0.0
        %v870 = vmax.f32 %v646, 0.0
        %v871 = vmax.f32 %v649, 0.0
        %v872 = vmax.f32 %v654, 0.0
        %v873 = vmax.f32 %v657, 0.0
        %v874 = vmax.f32 %v662, 0.0
        %v875 = vmax.f32 %v665, 0.0
        %v876 = vmax.f32 %v670, 0.0
        %v877 = vmax.f32 %v673, 0.0
        %v878 = vmax.f32 %v678, 0.0
        %v879 = vmax.f32 %v681, 0.0
        %v880 = vmax.f32 %v686, 0.0
        %v881 = vmax.f32 %v689, 0.0
        %v882 = vmax.f32 %v694, 0.0
        %v883 = vmax.f32 %v697, 0.0
        %v884 = vmax.f32 %v702, 0.0
        %v885 = vmax.f32 %v705, 0.0
        %v886 = vmax.f32 %v710, 0.0
        %v887 = vmax.f32 %v713, 0.0
        %v888 = vmax.f32 %v718, 0.0
        %v889 = vmax.f32 %v721, 0.0
        %v890 = vmax.f32 %v726, 0.0
        %v891 = vmax.f32 %v729, 0.0
        %v892 = vmax.f32 %v734, 0.0
        %v893 = vmax.f32 %v737, 0.0
        %v894 = vmax.f32 %v742, 0.0
        %v895 = vmax.f32 %v745, 0.0
        %v896 = vmax.f32 %v750, 0.0
        %v897 = vmax.f32 %v753, 0.0
        %v898 = vmax.f32 %v758, 0.0
        %v899 = vmax.f32 %v761, 0.0
        %v900 = vmax.f32 %v766, 0.0
        %v901 = vmax.f32 %v769, 0.0
        %v902 = vmax.f32 %v774, 0.0
        %v903 = vmax.f32 %v777, 0.0
        %v904 = vmax.f32 %v782, 0.0
        %v905 = vmax.f32 %v785, 0.0
        %v906 = vmax.f32 %v790, 0.0
        %v907 = vmax.f32 %v793, 0.0
        %v908 = vmax.f32 %v798, 0.0
        %v909 = vmax.f32 %v801, 0.0
        %v910 = vmax.f32 %v806, 0.0
        %v911 = vmax.f32 %v809, 0.0
        %v912 = vmax.f32 %v814, 0.0
        %v913 = vmax.f32 %v817, 0.0
        %v914 = vmax.f32 %v822, 0.0
        %v915 = vmax.f32 %v825, 0.0
        %v916 = vmax.f32 %v830, 0.0
        %v917 = vmax.f32 %v833, 0.0
        %v918 = vmax.f32 %v838, 0.0
        %v919 = vmax.f32 %v841, 0.0
        %v920 = vmax.f32 %v846, 0.0
        %v921 = vmax.f32 %v849, 0.0
        %v922 = vmax.f32 %v854, 0.0
        %v923 = vmax.f32 %v857, 0.0
        %v924 = vpack.c.bf16 %v861, %v860
        %v925 = vpack.c.bf16 %v863, %v862
        %v926 = vpack.c.bf16 %v865, %v864
        %v927 = vpack.c.bf16 %v867, %v866
        %v928 = vpack.c.bf16 %v869, %v868
        %v929 = vpack.c.bf16 %v871, %v870
        %v930 = vpack.c.bf16 %v873, %v872
        %v931 = vpack.c.bf16 %v875, %v874
        %v932 = vpack.c.bf16 %v877, %v876
        %v933 = vpack.c.bf16 %v879, %v878
        %v934 = vpack.c.bf16 %v881, %v880
        %v935 = vpack.c.bf16 %v883, %v882
        %v936 = vpack.c.bf16 %v885, %v884
        %v937 = vpack.c.bf16 %v887, %v886
        %v938 = vpack.c.bf16 %v889, %v888
        %v939 = vpack.c.bf16 %v891, %v890
        %v940 = vpack.c.bf16 %v893, %v892
        %v941 = vpack.c.bf16 %v895, %v894
        %v942 = vpack.c.bf16 %v897, %v896
        %v943 = vpack.c.bf16 %v899, %v898
        %v944 = vpack.c.bf16 %v901, %v900
        %v945 = vpack.c.bf16 %v903, %v902
        %v946 = vpack.c.bf16 %v905, %v904
        %v947 = vpack.c.bf16 %v907, %v906
        %v948 = vpack.c.bf16 %v909, %v908
        %v949 = vpack.c.bf16 %v911, %v910
        %v950 = vpack.c.bf16 %v913, %v912
        %v951 = vpack.c.bf16 %v915, %v914
        %v952 = vpack.c.bf16 %v917, %v916
        %v953 = vpack.c.bf16 %v919, %v918
        %v954 = vpack.c.bf16 %v921, %v920
        %v955 = vpack.c.bf16 %v923, %v922
        %v956 = vld [vmem:[%s3] sm:$0xf]
        %v957 = vld [vmem:[%s3 + $0x4] sm:$0xf]
        %v958 = vld [vmem:[%s3 + $0x8] sm:$0xf]
        %v959 = vld [vmem:[%s3 + $0xc] sm:$0xf]
        %v960 = vld [vmem:[%s3 + $0x10] sm:$0xf]
        %v961 = vld [vmem:[%s3 + $0x14] sm:$0xf]
        %v962 = vld [vmem:[%s3 + $0x18] sm:$0xf]
        %v963 = vld [vmem:[%s3 + $0x1c] sm:$0xf]
        %v964 = vld [vmem:[%s4] sm:$0x1]
        %v966 = vlaneseq
        %v967 = vshrl.u32 %v966, 7
        %v968 = vsub.s32 0, %v967
        %v969 = vrot.slane %v964, %v968
        %v979 = vunpack.c.l.b16 %v956
        %v980 = vunpack.c.l.b16 %v957
        %v981 = vunpack.c.l.b16 %v958
        %v982 = vunpack.c.l.b16 %v959
        %v983 = vunpack.c.l.b16 %v960
        %v984 = vunpack.c.l.b16 %v961
        %v985 = vunpack.c.l.b16 %v962
        %v986 = vunpack.c.l.b16 %v963
        %v987 = vpack.c.b16 %v980, %v979
        %v988 = vpack.c.b16 %v982, %v981
        %v989 = vpack.c.b16 %v984, %v983
        %v990 = vpack.c.b16 %v986, %v985
        %vm995 = vcmask 523264
        %v997 = vsel %vm995, %v924, 0
        %v1000 = vsel %vm995, %v925, 0
        %v1003 = vsel %vm995, %v926, 0
        %v1006 = vsel %vm995, %v927, 0
        %v1009 = vsel %vm995, %v928, 0
        %v1012 = vsel %vm995, %v929, 0
        %v1015 = vsel %vm995, %v930, 0
        %v1018 = vsel %vm995, %v931, 0
        %v1021 = vsel %vm995, %v932, 0
        %v1024 = vsel %vm995, %v933, 0
        %v1027 = vsel %vm995, %v934, 0
        %v1030 = vsel %vm995, %v935, 0
        %v1033 = vsel %vm995, %v936, 0
        %v1036 = vsel %vm995, %v937, 0
        %v1039 = vsel %vm995, %v938, 0
        %v1042 = vsel %vm995, %v939, 0
        %v1045 = vsel %vm995, %v940, 0
        %v1048 = vsel %vm995, %v941, 0
        %v1051 = vsel %vm995, %v942, 0
        %v1054 = vsel %vm995, %v943, 0
        %v1057 = vsel %vm995, %v944, 0
        %v1060 = vsel %vm995, %v945, 0
        %v1063 = vsel %vm995, %v946, 0
        %v1066 = vsel %vm995, %v947, 0
        %v1069 = vsel %vm995, %v948, 0
        %v1072 = vsel %vm995, %v949, 0
        %v1075 = vsel %vm995, %v950, 0
        %v1078 = vsel %vm995, %v951, 0
        %v1081 = vsel %vm995, %v952, 0
        %v1084 = vsel %vm995, %v953, 0
        %v1087 = vsel %vm995, %v954, 0
        %v1090 = vsel %vm995, %v955, 0
        %1092 = vmatprep.subr.bf16.mxu0 0
        %1093 = vmatpush1.bf16.msra.mxu0 0
        %1094 = vmatprep.subr.bf16.mxu0 0
        %1095 = vmatpush1.bf16.msra.mxu0 0
        %1096 = vmatprep.subr.bf16.mxu0 0
        %1097 = vmatpush1.bf16.msra.mxu0 0
        %1098 = vmatprep.subr.bf16.mxu0 0
        %1099 = vmatpush1.bf16.msra.mxu0 0
        %1100 = vmatprep.subr.bf16.mxu0 0
        %1101 = vmatpush1.bf16.msra.mxu0 %v990
        %1102 = vmatprep.subr.bf16.mxu0 0
        %1103 = vmatpush1.bf16.msra.mxu0 %v989
        %1104 = vmatprep.subr.bf16.mxu0 0
        %1105 = vmatpush1.bf16.msra.mxu0 %v988
        %1106 = vmatprep.subr.bf16.mxu0 0
        %1107 = vmatpush1.bf16.msra.mxu0 %v987
        %1108 = vmatprep.subr.bf16.mxu0 0
        %1109 = vmatpush2.bf16.msra.mxu0 0
        %1110 = vmatprep.subr.bf16.mxu0 0
        %1111 = vmatpush2.bf16.msra.mxu0 0
        %1112 = vmatprep.subr.bf16.mxu0 0
        %1113 = vmatpush2.bf16.msra.mxu0 0
        %1114 = vmatprep.subr.bf16.mxu0 0
        %1115 = vmatpush2.bf16.msra.mxu0 0
        %1116 = vmatprep.subr.bf16.mxu0 0
        %1117 = vmatpush2.bf16.msra.mxu0 0
        %1118 = vmatprep.subr.bf16.mxu0 0
        %1119 = vmatpush2.bf16.msra.mxu0 0
        %1120 = vmatprep.subr.bf16.mxu0 0
        %1121 = vmatpush2.bf16.msra.mxu0 0
        %1122 = vmatprep.subr.bf16.mxu0 0
        %1123 = vmatpush2.bf16.msra.mxu0 0
        %1124 = vmatprep.mubr.bf16.mxu0 0
        %1125 = vmatmul.mubr.bf16.gmra.mxu0 %v997
        %v1126 = vpop.f32.mrf.mxu0
        %v1127 = vadd.f32 %v969, %v1126
        %v1128 = vpop.f32.mrf.mxu0
        %v1129 = vpop.f32.mrf.mxu0
        %v1130 = vadd.f32 %v969, %v1129
        %v1131 = vpop.f32.mrf.mxu0
        %1132 = vmatprep.mubr.bf16.mxu0 0
        %1133 = vmatmul.mubr.bf16.gmra.mxu0 %v1000
        %v1134 = vpop.f32.mrf.mxu0
        %v1135 = vadd.f32 %v969, %v1134
        %v1136 = vpop.f32.mrf.mxu0
        %v1137 = vpop.f32.mrf.mxu0
        %v1138 = vadd.f32 %v969, %v1137
        %v1139 = vpop.f32.mrf.mxu0
        %1140 = vmatprep.mubr.bf16.mxu0 0
        %1141 = vmatmul.mubr.bf16.gmra.mxu0 %v1003
        %v1142 = vpop.f32.mrf.mxu0
        %v1143 = vadd.f32 %v969, %v1142
        %v1144 = vpop.f32.mrf.mxu0
        %v1145 = vpop.f32.mrf.mxu0
        %v1146 = vadd.f32 %v969, %v1145
        %v1147 = vpop.f32.mrf.mxu0
        %1148 = vmatprep.mubr.bf16.mxu0 0
        %1149 = vmatmul.mubr.bf16.gmra.mxu0 %v1006
        %v1150 = vpop.f32.mrf.mxu0
        %v1151 = vadd.f32 %v969, %v1150
        %v1152 = vpop.f32.mrf.mxu0
        %v1153 = vpop.f32.mrf.mxu0
        %v1154 = vadd.f32 %v969, %v1153
        %v1155 = vpop.f32.mrf.mxu0
        %1156 = vmatprep.mubr.bf16.mxu0 0
        %1157 = vmatmul.mubr.bf16.gmra.mxu0 %v1009
        %v1158 = vpop.f32.mrf.mxu0
        %v1159 = vadd.f32 %v969, %v1158
        %v1160 = vpop.f32.mrf.mxu0
        %v1161 = vpop.f32.mrf.mxu0
        %v1162 = vadd.f32 %v969, %v1161
        %v1163 = vpop.f32.mrf.mxu0
        %1164 = vmatprep.mubr.bf16.mxu0 0
        %1165 = vmatmul.mubr.bf16.gmra.mxu0 %v1012
        %v1166 = vpop.f32.mrf.mxu0
        %v1167 = vadd.f32 %v969, %v1166
        %v1168 = vpop.f32.mrf.mxu0
        %v1169 = vpop.f32.mrf.mxu0
        %v1170 = vadd.f32 %v969, %v1169
        %v1171 = vpop.f32.mrf.mxu0
        %1172 = vmatprep.mubr.bf16.mxu0 0
        %1173 = vmatmul.mubr.bf16.gmra.mxu0 %v1015
        %v1174 = vpop.f32.mrf.mxu0
        %v1175 = vadd.f32 %v969, %v1174
        %v1176 = vpop.f32.mrf.mxu0
        %v1177 = vpop.f32.mrf.mxu0
        %v1178 = vadd.f32 %v969, %v1177
        %v1179 = vpop.f32.mrf.mxu0
        %1180 = vmatprep.mubr.bf16.mxu0 0
        %1181 = vmatmul.mubr.bf16.gmra.mxu0 %v1018
        %v1182 = vpop.f32.mrf.mxu0
        %v1183 = vadd.f32 %v969, %v1182
        %v1184 = vpop.f32.mrf.mxu0
        %v1185 = vpop.f32.mrf.mxu0
        %v1186 = vadd.f32 %v969, %v1185
        %v1187 = vpop.f32.mrf.mxu0
        %1188 = vmatprep.mubr.bf16.mxu0 0
        %1189 = vmatmul.mubr.bf16.gmra.mxu0 %v1021
        %v1190 = vpop.f32.mrf.mxu0
        %v1191 = vadd.f32 %v969, %v1190
        %v1192 = vpop.f32.mrf.mxu0
        %v1193 = vpop.f32.mrf.mxu0
        %v1194 = vadd.f32 %v969, %v1193
        %v1195 = vpop.f32.mrf.mxu0
        %1196 = vmatprep.mubr.bf16.mxu0 0
        %1197 = vmatmul.mubr.bf16.gmra.mxu0 %v1024
        %v1198 = vpop.f32.mrf.mxu0
        %v1199 = vadd.f32 %v969, %v1198
        %v1200 = vpop.f32.mrf.mxu0
        %v1201 = vpop.f32.mrf.mxu0
        %v1202 = vadd.f32 %v969, %v1201
        %v1203 = vpop.f32.mrf.mxu0
        %1204 = vmatprep.mubr.bf16.mxu0 0
        %1205 = vmatmul.mubr.bf16.gmra.mxu0 %v1027
        %v1206 = vpop.f32.mrf.mxu0
        %v1207 = vadd.f32 %v969, %v1206
        %v1208 = vpop.f32.mrf.mxu0
        %v1209 = vpop.f32.mrf.mxu0
        %v1210 = vadd.f32 %v969, %v1209
        %v1211 = vpop.f32.mrf.mxu0
        %1212 = vmatprep.mubr.bf16.mxu0 0
        %1213 = vmatmul.mubr.bf16.gmra.mxu0 %v1030
        %v1214 = vpop.f32.mrf.mxu0
        %v1215 = vadd.f32 %v969, %v1214
        %v1216 = vpop.f32.mrf.mxu0
        %v1217 = vpop.f32.mrf.mxu0
        %v1218 = vadd.f32 %v969, %v1217
        %v1219 = vpop.f32.mrf.mxu0
        %1220 = vmatprep.mubr.bf16.mxu0 0
        %1221 = vmatmul.mubr.bf16.gmra.mxu0 %v1033
        %v1222 = vpop.f32.mrf.mxu0
        %v1223 = vadd.f32 %v969, %v1222
        %v1224 = vpop.f32.mrf.mxu0
        %v1225 = vpop.f32.mrf.mxu0
        %v1226 = vadd.f32 %v969, %v1225
        %v1227 = vpop.f32.mrf.mxu0
        %1228 = vmatprep.mubr.bf16.mxu0 0
        %1229 = vmatmul.mubr.bf16.gmra.mxu0 %v1036
        %v1230 = vpop.f32.mrf.mxu0
        %v1231 = vadd.f32 %v969, %v1230
        %v1232 = vpop.f32.mrf.mxu0
        %v1233 = vpop.f32.mrf.mxu0
        %v1234 = vadd.f32 %v969, %v1233
        %v1235 = vpop.f32.mrf.mxu0
        %1236 = vmatprep.mubr.bf16.mxu0 0
        %1237 = vmatmul.mubr.bf16.gmra.mxu0 %v1039
        %v1238 = vpop.f32.mrf.mxu0
        %v1239 = vadd.f32 %v969, %v1238
        %v1240 = vpop.f32.mrf.mxu0
        %v1241 = vpop.f32.mrf.mxu0
        %v1242 = vadd.f32 %v969, %v1241
        %v1243 = vpop.f32.mrf.mxu0
        %1244 = vmatprep.mubr.bf16.mxu0 0
        %1245 = vmatmul.mubr.bf16.gmra.mxu0 %v1042
        %v1246 = vpop.f32.mrf.mxu0
        %v1247 = vadd.f32 %v969, %v1246
        %v1248 = vpop.f32.mrf.mxu0
        %v1249 = vpop.f32.mrf.mxu0
        %v1250 = vadd.f32 %v969, %v1249
        %v1251 = vpop.f32.mrf.mxu0
        %1252 = vmatprep.mubr.bf16.mxu0 0
        %1253 = vmatmul.mubr.bf16.gmra.mxu0 %v1045
        %v1254 = vpop.f32.mrf.mxu0
        %v1255 = vadd.f32 %v969, %v1254
        %v1256 = vpop.f32.mrf.mxu0
        %v1257 = vpop.f32.mrf.mxu0
        %v1258 = vadd.f32 %v969, %v1257
        %v1259 = vpop.f32.mrf.mxu0
        %1260 = vmatprep.mubr.bf16.mxu0 0
        %1261 = vmatmul.mubr.bf16.gmra.mxu0 %v1048
        %v1262 = vpop.f32.mrf.mxu0
        %v1263 = vadd.f32 %v969, %v1262
        %v1264 = vpop.f32.mrf.mxu0
        %v1265 = vpop.f32.mrf.mxu0
        %v1266 = vadd.f32 %v969, %v1265
        %v1267 = vpop.f32.mrf.mxu0
        %1268 = vmatprep.mubr.bf16.mxu0 0
        %1269 = vmatmul.mubr.bf16.gmra.mxu0 %v1051
        %v1270 = vpop.f32.mrf.mxu0
        %v1271 = vadd.f32 %v969, %v1270
        %v1272 = vpop.f32.mrf.mxu0
        %v1273 = vpop.f32.mrf.mxu0
        %v1274 = vadd.f32 %v969, %v1273
        %v1275 = vpop.f32.mrf.mxu0
        %1276 = vmatprep.mubr.bf16.mxu0 0
        %1277 = vmatmul.mubr.bf16.gmra.mxu0 %v1054
        %v1278 = vpop.f32.mrf.mxu0
        %v1279 = vadd.f32 %v969, %v1278
        %v1280 = vpop.f32.mrf.mxu0
        %v1281 = vpop.f32.mrf.mxu0
        %v1282 = vadd.f32 %v969, %v1281
        %v1283 = vpop.f32.mrf.mxu0
        %1284 = vmatprep.mubr.bf16.mxu0 0
        %1285 = vmatmul.mubr.bf16.gmra.mxu0 %v1057
        %v1286 = vpop.f32.mrf.mxu0
        %v1287 = vadd.f32 %v969, %v1286
        %v1288 = vpop.f32.mrf.mxu0
        %v1289 = vpop.f32.mrf.mxu0
        %v1290 = vadd.f32 %v969, %v1289
        %v1291 = vpop.f32.mrf.mxu0
        %1292 = vmatprep.mubr.bf16.mxu0 0
        %1293 = vmatmul.mubr.bf16.gmra.mxu0 %v1060
        %v1294 = vpop.f32.mrf.mxu0
        %v1295 = vadd.f32 %v969, %v1294
        %v1296 = vpop.f32.mrf.mxu0
        %v1297 = vpop.f32.mrf.mxu0
        %v1298 = vadd.f32 %v969, %v1297
        %v1299 = vpop.f32.mrf.mxu0
        %1300 = vmatprep.mubr.bf16.mxu0 0
        %1301 = vmatmul.mubr.bf16.gmra.mxu0 %v1063
        %v1302 = vpop.f32.mrf.mxu0
        %v1303 = vadd.f32 %v969, %v1302
        %v1304 = vpop.f32.mrf.mxu0
        %v1305 = vpop.f32.mrf.mxu0
        %v1306 = vadd.f32 %v969, %v1305
        %v1307 = vpop.f32.mrf.mxu0
        %1308 = vmatprep.mubr.bf16.mxu0 0
        %1309 = vmatmul.mubr.bf16.gmra.mxu0 %v1066
        %v1310 = vpop.f32.mrf.mxu0
        %v1311 = vadd.f32 %v969, %v1310
        %v1312 = vpop.f32.mrf.mxu0
        %v1313 = vpop.f32.mrf.mxu0
        %v1314 = vadd.f32 %v969, %v1313
        %v1315 = vpop.f32.mrf.mxu0
        %1316 = vmatprep.mubr.bf16.mxu0 0
        %1317 = vmatmul.mubr.bf16.gmra.mxu0 %v1069
        %v1318 = vpop.f32.mrf.mxu0
        %v1319 = vadd.f32 %v969, %v1318
        %v1320 = vpop.f32.mrf.mxu0
        %v1321 = vpop.f32.mrf.mxu0
        %v1322 = vadd.f32 %v969, %v1321
        %v1323 = vpop.f32.mrf.mxu0
        %1324 = vmatprep.mubr.bf16.mxu0 0
        %1325 = vmatmul.mubr.bf16.gmra.mxu0 %v1072
        %v1326 = vpop.f32.mrf.mxu0
        %v1327 = vadd.f32 %v969, %v1326
        %v1328 = vpop.f32.mrf.mxu0
        %v1329 = vpop.f32.mrf.mxu0
        %v1330 = vadd.f32 %v969, %v1329
        %v1331 = vpop.f32.mrf.mxu0
        %1332 = vmatprep.mubr.bf16.mxu0 0
        %1333 = vmatmul.mubr.bf16.gmra.mxu0 %v1075
        %v1334 = vpop.f32.mrf.mxu0
        %v1335 = vadd.f32 %v969, %v1334
        %v1336 = vpop.f32.mrf.mxu0
        %v1337 = vpop.f32.mrf.mxu0
        %v1338 = vadd.f32 %v969, %v1337
        %v1339 = vpop.f32.mrf.mxu0
        %1340 = vmatprep.mubr.bf16.mxu0 0
        %1341 = vmatmul.mubr.bf16.gmra.mxu0 %v1078
        %v1342 = vpop.f32.mrf.mxu0
        %v1343 = vadd.f32 %v969, %v1342
        %v1344 = vpop.f32.mrf.mxu0
        %v1345 = vpop.f32.mrf.mxu0
        %v1346 = vadd.f32 %v969, %v1345
        %v1347 = vpop.f32.mrf.mxu0
        %1348 = vmatprep.mubr.bf16.mxu0 0
        %1349 = vmatmul.mubr.bf16.gmra.mxu0 %v1081
        %v1350 = vpop.f32.mrf.mxu0
        %v1351 = vadd.f32 %v969, %v1350
        %v1352 = vpop.f32.mrf.mxu0
        %v1353 = vpop.f32.mrf.mxu0
        %v1354 = vadd.f32 %v969, %v1353
        %v1355 = vpop.f32.mrf.mxu0
        %1356 = vmatprep.mubr.bf16.mxu0 0
        %1357 = vmatmul.mubr.bf16.gmra.mxu0 %v1084
        %v1358 = vpop.f32.mrf.mxu0
        %v1359 = vadd.f32 %v969, %v1358
        %v1360 = vpop.f32.mrf.mxu0
        %v1361 = vpop.f32.mrf.mxu0
        %v1362 = vadd.f32 %v969, %v1361
        %v1363 = vpop.f32.mrf.mxu0
        %1364 = vmatprep.mubr.bf16.mxu0 0
        %1365 = vmatmul.mubr.bf16.gmra.mxu0 %v1087
        %v1366 = vpop.f32.mrf.mxu0
        %v1367 = vadd.f32 %v969, %v1366
        %v1368 = vpop.f32.mrf.mxu0
        %v1369 = vpop.f32.mrf.mxu0
        %v1370 = vadd.f32 %v969, %v1369
        %v1371 = vpop.f32.mrf.mxu0
        %1372 = vmatprep.mubr.bf16.mxu0 0
        %1373 = vmatmul.mubr.bf16.gmra.mxu0 %v1090
        %v1374 = vpop.f32.mrf.mxu0
        %v1375 = vadd.f32 %v969, %v1374
        %v1376 = vpop.f32.mrf.mxu0
        %v1377 = vpop.f32.mrf.mxu0
        %v1378 = vadd.f32 %v969, %v1377
        %v1379 = vpop.f32.mrf.mxu0
        %1380 = vdwg.mxu0
        %v1381 = vmax.f32 %v1127, 0.0
        %v1382 = vmax.f32 %v1130, 0.0
        %v1383 = vmax.f32 %v1135, 0.0
        %v1384 = vmax.f32 %v1138, 0.0
        %v1385 = vmax.f32 %v1143, 0.0
        %v1386 = vmax.f32 %v1146, 0.0
        %v1387 = vmax.f32 %v1151, 0.0
        %v1388 = vmax.f32 %v1154, 0.0
        %v1389 = vmax.f32 %v1159, 0.0
        %v1390 = vmax.f32 %v1162, 0.0
        %v1391 = vmax.f32 %v1167, 0.0
        %v1392 = vmax.f32 %v1170, 0.0
        %v1393 = vmax.f32 %v1175, 0.0
        %v1394 = vmax.f32 %v1178, 0.0
        %v1395 = vmax.f32 %v1183, 0.0
        %v1396 = vmax.f32 %v1186, 0.0
        %v1397 = vmax.f32 %v1191, 0.0
        %v1398 = vmax.f32 %v1194, 0.0
        %v1399 = vmax.f32 %v1199, 0.0
        %v1400 = vmax.f32 %v1202, 0.0
        %v1401 = vmax.f32 %v1207, 0.0
        %v1402 = vmax.f32 %v1210, 0.0
        %v1403 = vmax.f32 %v1215, 0.0
        %v1404 = vmax.f32 %v1218, 0.0
        %v1405 = vmax.f32 %v1223, 0.0
        %v1406 = vmax.f32 %v1226, 0.0
        %v1407 = vmax.f32 %v1231, 0.0
        %v1408 = vmax.f32 %v1234, 0.0
        %v1409 = vmax.f32 %v1239, 0.0
        %v1410 = vmax.f32 %v1242, 0.0
        %v1411 = vmax.f32 %v1247, 0.0
        %v1412 = vmax.f32 %v1250, 0.0
        %v1413 = vmax.f32 %v1255, 0.0
        %v1414 = vmax.f32 %v1258, 0.0
        %v1415 = vmax.f32 %v1263, 0.0
        %v1416 = vmax.f32 %v1266, 0.0
        %v1417 = vmax.f32 %v1271, 0.0
        %v1418 = vmax.f32 %v1274, 0.0
        %v1419 = vmax.f32 %v1279, 0.0
        %v1420 = vmax.f32 %v1282, 0.0
        %v1421 = vmax.f32 %v1287, 0.0
        %v1422 = vmax.f32 %v1290, 0.0
        %v1423 = vmax.f32 %v1295, 0.0
        %v1424 = vmax.f32 %v1298, 0.0
        %v1425 = vmax.f32 %v1303, 0.0
        %v1426 = vmax.f32 %v1306, 0.0
        %v1427 = vmax.f32 %v1311, 0.0
        %v1428 = vmax.f32 %v1314, 0.0
        %v1429 = vmax.f32 %v1319, 0.0
        %v1430 = vmax.f32 %v1322, 0.0
        %v1431 = vmax.f32 %v1327, 0.0
        %v1432 = vmax.f32 %v1330, 0.0
        %v1433 = vmax.f32 %v1335, 0.0
        %v1434 = vmax.f32 %v1338, 0.0
        %v1435 = vmax.f32 %v1343, 0.0
        %v1436 = vmax.f32 %v1346, 0.0
        %v1437 = vmax.f32 %v1351, 0.0
        %v1438 = vmax.f32 %v1354, 0.0
        %v1439 = vmax.f32 %v1359, 0.0
        %v1440 = vmax.f32 %v1362, 0.0
        %v1441 = vmax.f32 %v1367, 0.0
        %v1442 = vmax.f32 %v1370, 0.0
        %v1443 = vmax.f32 %v1375, 0.0
        %v1444 = vmax.f32 %v1378, 0.0
        %1445 = vst [vmem:[%s218] sm:$0xff] %v1381
        %1446 = vst [vmem:[%s218 + $0x8] sm:$0xff] %v1382
        %1447 = vst [vmem:[%s218 + $0x10] sm:$0xff] %v1383
        %1448 = vst [vmem:[%s218 + $0x18] sm:$0xff] %v1384
        %1449 = vst [vmem:[%s218 + $0x20] sm:$0xff] %v1385
        %1450 = vst [vmem:[%s218 + $0x28] sm:$0xff] %v1386
        %1451 = vst [vmem:[%s218 + $0x30] sm:$0xff] %v1387
        %1452 = vst [vmem:[%s218 + $0x38] sm:$0xff] %v1388
        %1453 = vst [vmem:[%s218 + $0x40] sm:$0xff] %v1389
        %1454 = vst [vmem:[%s218 + $0x48] sm:$0xff] %v1390
        %1455 = vst [vmem:[%s218 + $0x50] sm:$0xff] %v1391
        %1456 = vst [vmem:[%s218 + $0x58] sm:$0xff] %v1392
        %1457 = vst [vmem:[%s218 + $0x60] sm:$0xff] %v1393
        %1458 = vst [vmem:[%s218 + $0x68] sm:$0xff] %v1394
        %1459 = vst [vmem:[%s218 + $0x70] sm:$0xff] %v1395
        %1460 = vst [vmem:[%s218 + $0x78] sm:$0xff] %v1396
        %1461 = vst [vmem:[%s218 + $0x80] sm:$0xff] %v1397
        %1462 = vst [vmem:[%s218 + $0x88] sm:$0xff] %v1398
        %1463 = vst [vmem:[%s218 + $0x90] sm:$0xff] %v1399
        %1464 = vst [vmem:[%s218 + $0x98] sm:$0xff] %v1400
        %1465 = vst [vmem:[%s218 + $0xa0] sm:$0xff] %v1401
        %1466 = vst [vmem:[%s218 + $0xa8] sm:$0xff] %v1402
        %1467 = vst [vmem:[%s218 + $0xb0] sm:$0xff] %v1403
        %1468 = vst [vmem:[%s218 + $0xb8] sm:$0xff] %v1404
        %1469 = vst [vmem:[%s218 + $0xc0] sm:$0xff] %v1405
        %1470 = vst [vmem:[%s218 + $0xc8] sm:$0xff] %v1406
        %1471 = vst [vmem:[%s218 + $0xd0] sm:$0xff] %v1407
        %1472 = vst [vmem:[%s218 + $0xd8] sm:$0xff] %v1408
        %1473 = vst [vmem:[%s218 + $0xe0] sm:$0xff] %v1409
        %1474 = vst [vmem:[%s218 + $0xe8] sm:$0xff] %v1410
        %1475 = vst [vmem:[%s218 + $0xf0] sm:$0xff] %v1411
        %1476 = vst [vmem:[%s218 + $0xf8] sm:$0xff] %v1412
        %1477 = vst [vmem:[%s218 + $0x100] sm:$0xff] %v1413
        %1478 = vst [vmem:[%s218 + $0x108] sm:$0xff] %v1414
        %1479 = vst [vmem:[%s218 + $0x110] sm:$0xff] %v1415
        %1480 = vst [vmem:[%s218 + $0x118] sm:$0xff] %v1416
        %1481 = vst [vmem:[%s218 + $0x120] sm:$0xff] %v1417
        %1482 = vst [vmem:[%s218 + $0x128] sm:$0xff] %v1418
        %1483 = vst [vmem:[%s218 + $0x130] sm:$0xff] %v1419
        %1484 = vst [vmem:[%s218 + $0x138] sm:$0xff] %v1420
        %1485 = vst [vmem:[%s218 + $0x140] sm:$0xff] %v1421
        %1486 = vst [vmem:[%s218 + $0x148] sm:$0xff] %v1422
        %1487 = vst [vmem:[%s218 + $0x150] sm:$0xff] %v1423
        %1488 = vst [vmem:[%s218 + $0x158] sm:$0xff] %v1424
        %1489 = vst [vmem:[%s218 + $0x160] sm:$0xff] %v1425
        %1490 = vst [vmem:[%s218 + $0x168] sm:$0xff] %v1426
        %1491 = vst [vmem:[%s218 + $0x170] sm:$0xff] %v1427
        %1492 = vst [vmem:[%s218 + $0x178] sm:$0xff] %v1428
        %1493 = vst [vmem:[%s218 + $0x180] sm:$0xff] %v1429
        %1494 = vst [vmem:[%s218 + $0x188] sm:$0xff] %v1430
        %1495 = vst [vmem:[%s218 + $0x190] sm:$0xff] %v1431
        %1496 = vst [vmem:[%s218 + $0x198] sm:$0xff] %v1432
        %1497 = vst [vmem:[%s218 + $0x1a0] sm:$0xff] %v1433
        %1498 = vst [vmem:[%s218 + $0x1a8] sm:$0xff] %v1434
        %1499 = vst [vmem:[%s218 + $0x1b0] sm:$0xff] %v1435
        %1500 = vst [vmem:[%s218 + $0x1b8] sm:$0xff] %v1436
        %1501 = vst [vmem:[%s218 + $0x1c0] sm:$0xff] %v1437
        %1502 = vst [vmem:[%s218 + $0x1c8] sm:$0xff] %v1438
        %1503 = vst [vmem:[%s218 + $0x1d0] sm:$0xff] %v1439
        %1504 = vst [vmem:[%s218 + $0x1d8] sm:$0xff] %v1440
        %1505 = vst [vmem:[%s218 + $0x1e0] sm:$0xff] %v1441
        %1506 = vst [vmem:[%s218 + $0x1e8] sm:$0xff] %v1442
        %1507 = vst [vmem:[%s218 + $0x1f0] sm:$0xff] %v1443
        %1508 = vst [vmem:[%s218 + $0x1f8] sm:$0xff] %v1444
        %s1509 = sand.u32 %s137, 1
        %s1510 = scalar_lea.sflag [#allocation3], %s1509
        %s1511 = sand.u32 %s137, 1
        %s1512 = smul.addr %s1511, 512
        %s1513 = scalar_lea.vmem [#allocation2], %s1512
        // Predicated region
        $region41: #{tpu_custom_call.1} parent=39 // pred_check
          %p1514 = pneg %p147
        $region42: #{tpu_custom_call.1} parent=39 // pred_check_branch
          %1516 = sbr.rel (%p1514) target = $region44
        $region43: #{tpu_custom_call.1} parent=39 // pred_region
          %s1517 = smul.u32 64, %s19
          %s1519 = ssub.s32 8192, 8192
          %1520 = vsyncadd %s1510, %s1519
          %s1521 = smul.addr %s1517, 128
          %s1522 = scalar_lea.hbm %s5, %s1521
          %s1523 = sshll.u32 %s1513, 4
          %s1524 = int_to_ptr.vmem [resolvable:$true] %s1523
          %1529 = dma.vmem_to_hbm [thread:$0]  %s1524, 8192, %s1522, %s1510, 128, 128, 8
        $region44: #{tpu_custom_call.1} parent=39 // pred_fallthru
          _
      $region40: #{tpu_custom_call.1} parent=5 // pred_fallthru
        _
      %p1530 = scmp.le.s32.totalorder 2, %s14
      // Predicated region
      $region45: #{tpu_custom_call.1} parent=5 // pred_check
        %p1531 = pneg %p1530
      $region46: #{tpu_custom_call.1} parent=5 // pred_check_branch
        %1533 = sbr.rel (%p1531) target = $region48
      $region47: #{tpu_custom_call.1} parent=5 // pred_region
        %s1534 = ssub.s32 %s14, 2
        // Predicated region
        $region49: #{tpu_custom_call.1} parent=47 // pred_check
          %p1535 = pneg %p153
        $region50: #{tpu_custom_call.1} parent=47 // pred_check_branch
          %1537 = sbr.rel (%p1535) target = $region52
        $region51: #{tpu_custom_call.1} parent=47 // pred_region
          %s1538 = sand.u32 %s138, 1
          %s1539 = scalar_lea.sflag [#allocation3], %s1538
          %s1540 = sand.u32 %s138, 1
          %s1541 = smul.addr %s1540, 512
          %s1542 = scalar_lea.vmem [#allocation2], %s1541
          %1543 = dma.done %s1539, 8192
        $region52: #{tpu_custom_call.1} parent=47 // pred_fallthru
          _
      $region48: #{tpu_custom_call.1} parent=5 // pred_fallthru
        _
    $region6: #{tpu_custom_call.1} parent=1 // loop_footer
      %s18 = sadd.s32 1, %s14
    $region7: #{tpu_custom_call.1} parent=1 // loop_footer_branch
      %13 = sbr.rel target = $region3
    $region8: #{tpu_custom_call.1} parent=1 // loop_exit
      _
    %1544 = vsyncpa [#allocation3], 1
    %s1545 = scalar_lea.sflag [#allocation3], 1
    %1546 = vsyncpa %s1545, 1

</llo_original>
